<compile_context>
chip_gen: v7x
topology: tpu7x:2x2x1
jax: 0.10.0
libtpu: 0.0.40
codegen_flags: <defaults>
</compile_context>

<pallas_src>
import jax
import jax.numpy as jnp
import numpy as np
from jax.experimental import pallas as pl
from jax.experimental.pallas import tpu as pltpu

MID_CHANNELS = 128  # mid_channels in ProposalBlock


def _pick_row_block(Hout, Wout):
    """Row-block height TH (a divisor of Hout): whole plane when small, otherwise the
    smallest divisor reaching M = TH*Wout >= 256 output pixels per MXU dot."""
    if Hout * Wout <= 512:
        return Hout
    for d in range(1, Hout + 1):
        if Hout % d == 0 and d * Wout >= 256:
            return d
    return Hout


def _make_kernel(sh, sw, Cin, TH, Wout, fuse_taps):
    """Fused conv3x3 -> bias -> ReLU -> conv1x1 -> bias for one row-block of one image."""
    M = TH * Wout

    def kernel(x_ref, w1_ref, b1_ref, w2_ref, b2_ref, z_ref, y_ref):
        # x_ref : (1, sh, Hphase, sw, Wphase, Cin)  full padded image (phase layout), resident
        # w1_ref: (9*Cin, 128)   rows ordered (kh*3+kw)*Cin + ci
        # b1_ref: (1, 128)
        # w2_ref: (128, CPAD)
        # b2_ref: (1, CPAD)
        # z_ref : (1, TH, Wout, CPAD)   lane-dense tidy-conv output
        # y_ref : (1, TH, Wout, 128)    lane-dense post-ReLU activations
        h0 = pl.program_id(1) * TH
        taps = []
        for kh in range(3):
            ph, qh = kh % sh, kh // sh
            rows = x_ref[0, ph, pl.ds(h0 + qh, TH)]          # (TH, sw, Wphase, Cin)
            for kw in range(3):
                pw, qw = kw % sw, kw // sw
                taps.append(rows[:, pw, qw:qw + Wout, :].reshape(M, Cin))

        if fuse_taps:
            # small Cin: pack all 9 taps along K -> a single MXU dot with K = 9*Cin
            patch = jnp.concatenate(taps, axis=-1)           # (M, 9*Cin)
            acc = jnp.dot(patch, w1_ref[...], preferred_element_type=jnp.float32)
        else:
            # large Cin: K already MXU-dense, 9 dots accumulated in f32
            acc = jnp.zeros((M, MID_CHANNELS), jnp.float32)
            for idx, tap in enumerate(taps):
                acc = acc + jnp.dot(tap, w1_ref[idx * Cin:(idx + 1) * Cin, :],
                                    preferred_element_type=jnp.float32)

        y = jnp.maximum(acc + b1_ref[...], 0.0)              # (M, 128) f32
        y_ref[...] = y.reshape(1, TH, Wout, MID_CHANNELS).astype(y_ref.dtype)
        z = jnp.dot(y, w2_ref[...], preferred_element_type=jnp.float32) + b2_ref[...]
        z_ref[...] = z.reshape(1, TH, Wout, -1).astype(z_ref.dtype)

    return kernel


def proposal_block_forward(x, w1, b1, w2, b2, stride):
    """x: (N, Cin, H, W) f32.  w1: (128, Cin, 3, 3), b1: (128,),
    w2: (Cout, 128, 1, 1), b2: (Cout,).  Returns (z, y) matching PyTorch."""
    if isinstance(stride, (tuple, list)):
        sh, sw = int(stride[0]), int(stride[1])
    else:
        sh = sw = int(stride)

    N, Cin, H, W = x.shape
    Cout = w2.shape[0]
    Hout = (H + 2 - 3) // sh + 1
    Wout = (W + 2 - 3) // sw + 1
    CPAD = ((Cout + 127) // 128) * 128

    Hphase = -(-(H + 2) // sh)          # ceil((H+2)/sh)
    Wphase = -(-(W + 2) // sw)          # ceil((W+2)/sw)
    Hpad_r = Hphase * sh
    Wpad_r = Wphase * sw

    # ---- glue (one ~input-sized pass): NCHW -> padded NHWC -> H/W phase layout ----
    x_nhwc = jnp.transpose(x, (0, 2, 3, 1))                                # (N, H, W, Cin)
    x_p = jnp.pad(x_nhwc, ((0, 0), (1, Hpad_r - H - 1), (1, Wpad_r - W - 1), (0, 0)))
    # x_g[n, ph, h2, pw, w2, c] == x_p[n, h2*sh + ph, w2*sw + pw, c]
    x_g = x_p.reshape(N, Hphase, sh, Wphase, sw, Cin).transpose(0, 2, 1, 4, 3, 5)

    # weights: w1_k[(kh*3+kw)*Cin + ci, m] = w1[m, ci, kh, kw]
    w1_k = jnp.transpose(w1, (2, 3, 1, 0)).reshape(9 * Cin, MID_CHANNELS)
    b1_row = b1.reshape(1, MID_CHANNELS)
    w2_mat = w2.reshape(Cout, MID_CHANNELS).T                              # (128, Cout)
    w2_pad = jnp.pad(w2_mat, ((0, 0), (0, CPAD - Cout)))                   # (128, CPAD)
    b2_pad = jnp.pad(b2, (0, CPAD - Cout)).reshape(1, CPAD)

    TH = _pick_row_block(Hout, Wout)
    HB = Hout // TH
    fuse_taps = Cin < MID_CHANNELS
    kernel = _make_kernel(sh, sw, Cin, TH, Wout, fuse_taps)

    z_p, y_p = pl.pallas_call(
        kernel,
        out_shape=(
            jax.ShapeDtypeStruct((N, Hout, Wout, CPAD), jnp.float32),
            jax.ShapeDtypeStruct((N, Hout, Wout, MID_CHANNELS), jnp.float32),
        ),
        grid_spec=pltpu.PrefetchScalarGridSpec(
            num_scalar_prefetch=0,
            grid=(N, HB),
            in_specs=[
                # single input stream: whole padded image, same block across the row-block axis
                pl.BlockSpec((1, sh, Hphase, sw, Wphase, Cin),
                             lambda n, hb: (n, 0, 0, 0, 0, 0)),
                pl.BlockSpec((9 * Cin, MID_CHANNELS), lambda n, hb: (0, 0)),
                pl.BlockSpec((1, MID_CHANNELS), lambda n, hb: (0, 0)),
                pl.BlockSpec((MID_CHANNELS, CPAD), lambda n, hb: (0, 0)),
                pl.BlockSpec((1, CPAD), lambda n, hb: (0, 0)),
            ],
            out_specs=[
                pl.BlockSpec((1, TH, Wout, CPAD), lambda n, hb: (n, hb, 0, 0)),
                pl.BlockSpec((1, TH, Wout, MID_CHANNELS), lambda n, hb: (n, hb, 0, 0)),
            ],
        ),
        compiler_params=pltpu.CompilerParams(
            dimension_semantics=("parallel", "parallel"),
            vmem_limit_bytes=32 * 1024 * 1024),
    )(x_g, w1_k, b1_row, w2_pad, b2_pad)

    # tiny glue: back to PyTorch layouts
    # TODO(synk): if the downstream consumer accepts NHWC activations, drop this y transpose
    # (it is an extra full HBM pass of the largest tensor).
    y = jnp.transpose(y_p, (0, 3, 1, 2))                                   # (N, 128, Hout, Wout)
    z = jnp.transpose(z_p[..., :Cout], (0, 3, 1, 2)).reshape(N, -1)        # == z.view(N, -1)
    return z, y


def _reference_forward(x, w1, b1, w2, b2, stride):
    """Pure-JAX reference with lax convolutions (for correctness check)."""
    s = (stride, stride) if isinstance(stride, int) else tuple(stride)
    y = jax.lax.conv_general_dilated(
        x, w1, window_strides=s, padding=((1, 1), (1, 1)),
        dimension_numbers=("NCHW", "OIHW", "NCHW"))
    y = y + b1.reshape(1, -1, 1, 1)
    y = jnp.maximum(y, 0.0)
    z = jax.lax.conv_general_dilated(
        y, w2, window_strides=(1, 1), padding=((0, 0), (0, 0)),
        dimension_numbers=("NCHW", "OIHW", "NCHW"))
    z = z + b2.reshape(1, -1, 1, 1)
    return z.reshape(z.shape[0], -1), y


if __name__ == "__main__":
    key = jax.random.PRNGKey(0)
    N, Cin, H, W = 2, 4, 16, 16
    Cout = 6
    stride = 2

    kx, k1, kb1, k2, kb2 = jax.random.split(key, 5)
    x = jax.random.normal(kx, (N, Cin, H, W), dtype=jnp.float32)
    w1 = jax.random.normal(k1, (MID_CHANNELS, Cin, 3, 3), dtype=jnp.float32) * 0.05
    b1 = jax.random.normal(kb1, (MID_CHANNELS,), dtype=jnp.float32) * 0.05
    w2 = jax.random.normal(k2, (Cout, MID_CHANNELS, 1, 1), dtype=jnp.float32) * 0.05
    b2 = jax.random.normal(kb2, (Cout,), dtype=jnp.float32) * 0.05

    z, y = proposal_block_forward(x, w1, b1, w2, b2, stride)
    jax.block_until_ready((z, y))

    z_ref, y_ref = _reference_forward(x, w1, b1, w2, b2, stride)
    np.testing.assert_allclose(np.asarray(y), np.asarray(y_ref), rtol=1e-4, atol=1e-4)
    np.testing.assert_allclose(np.asarray(z), np.asarray(z_ref), rtol=1e-4, atol=1e-4)

    print("KERNEL_OK")
</pallas_src>

<mosaic_0001>
module attributes {stable_mosaic.version = 11 : i64} {
  func.func @kernel(%arg0: i32, %arg1: i32, %arg2: memref<1x2x9x2x9x4xf32, #tpu.memory_space<vmem>>, %arg3: memref<36x128xf32, #tpu.memory_space<vmem>>, %arg4: memref<1x128xf32, #tpu.memory_space<vmem>>, %arg5: memref<128x128xf32, #tpu.memory_space<vmem>>, %arg6: memref<1x128xf32, #tpu.memory_space<vmem>>, %arg7: memref<1x8x8x128xf32, #tpu.memory_space<vmem>>, %arg8: memref<1x8x8x128xf32, #tpu.memory_space<vmem>>) attributes {dimension_semantics = [#tpu.dimension_semantics<parallel>, #tpu.dimension_semantics<parallel>], iteration_bounds = array<i64: 2, 1>, scalar_prefetch = 0 : i64, scratch_operands = 0 : i64, tpu.core_type = #tpu.core_type<tc>, window_params = [{transform_indices = @transform_0, window_bounds = array<i64: 1, 2, 9, 2, 9, 4>}, {pipeline_mode = #tpu.pipeline_mode<synchronous>, transform_indices = @transform_1, window_bounds = array<i64: 36, 128>}, {pipeline_mode = #tpu.pipeline_mode<synchronous>, transform_indices = @transform_2, window_bounds = array<i64: 1, 128>}, {pipeline_mode = #tpu.pipeline_mode<synchronous>, transform_indices = @transform_3, window_bounds = array<i64: 128, 128>}, {pipeline_mode = #tpu.pipeline_mode<synchronous>, transform_indices = @transform_4, window_bounds = array<i64: 1, 128>}, {transform_indices = @transform_5, window_bounds = array<i64: 1, 8, 8, 128>}, {transform_indices = @transform_6, window_bounds = array<i64: 1, 8, 8, 128>}]} {
    %c8_i32 = arith.constant 8 : i32
    %0 = arith.muli %arg1, %c8_i32 : i32
    %c0_i32 = arith.constant 0 : i32
    %1 = arith.addi %0, %c0_i32 : i32
    %c0 = arith.constant 0 : index
    %c0_0 = arith.constant 0 : index
    %2 = arith.index_cast %1 : i32 to index
    %c0_1 = arith.constant 0 : index
    %c0_2 = arith.constant 0 : index
    %c0_3 = arith.constant 0 : index
    %3 = vector.load %arg2[%c0, %c0_0, %2, %c0_1, %c0_2, %c0_3] : memref<1x2x9x2x9x4xf32, #tpu.memory_space<vmem>>, vector<1x1x8x2x9x4xf32>
    %4 = vector.shape_cast %3 : vector<1x1x8x2x9x4xf32> to vector<8x2x9x4xf32>
    %5 = vector.extract_strided_slice %4 {offsets = [0, 0, 0, 0], sizes = [8, 1, 8, 4], strides = [1, 1, 1, 1]} : vector<8x2x9x4xf32> to vector<8x1x8x4xf32>
    %6 = vector.shape_cast %5 : vector<8x1x8x4xf32> to vector<8x8x4xf32>
    %7 = vector.shape_cast %6 : vector<8x8x4xf32> to vector<64x4xf32>
    %8 = vector.extract_strided_slice %4 {offsets = [0, 1, 0, 0], sizes = [8, 1, 8, 4], strides = [1, 1, 1, 1]} : vector<8x2x9x4xf32> to vector<8x1x8x4xf32>
    %9 = vector.shape_cast %8 : vector<8x1x8x4xf32> to vector<8x8x4xf32>
    %10 = vector.shape_cast %9 : vector<8x8x4xf32> to vector<64x4xf32>
    %11 = vector.extract_strided_slice %4 {offsets = [0, 0, 1, 0], sizes = [8, 1, 8, 4], strides = [1, 1, 1, 1]} : vector<8x2x9x4xf32> to vector<8x1x8x4xf32>
    %12 = vector.shape_cast %11 : vector<8x1x8x4xf32> to vector<8x8x4xf32>
    %13 = vector.shape_cast %12 : vector<8x8x4xf32> to vector<64x4xf32>
    %c0_i32_4 = arith.constant 0 : i32
    %14 = arith.addi %0, %c0_i32_4 : i32
    %c0_5 = arith.constant 0 : index
    %c1 = arith.constant 1 : index
    %15 = arith.index_cast %14 : i32 to index
    %c0_6 = arith.constant 0 : index
    %c0_7 = arith.constant 0 : index
    %c0_8 = arith.constant 0 : index
    %16 = vector.load %arg2[%c0_5, %c1, %15, %c0_6, %c0_7, %c0_8] : memref<1x2x9x2x9x4xf32, #tpu.memory_space<vmem>>, vector<1x1x8x2x9x4xf32>
    %17 = vector.shape_cast %16 : vector<1x1x8x2x9x4xf32> to vector<8x2x9x4xf32>
    %18 = vector.extract_strided_slice %17 {offsets = [0, 0, 0, 0], sizes = [8, 1, 8, 4], strides = [1, 1, 1, 1]} : vector<8x2x9x4xf32> to vector<8x1x8x4xf32>
    %19 = vector.shape_cast %18 : vector<8x1x8x4xf32> to vector<8x8x4xf32>
    %20 = vector.shape_cast %19 : vector<8x8x4xf32> to vector<64x4xf32>
    %21 = vector.extract_strided_slice %17 {offsets = [0, 1, 0, 0], sizes = [8, 1, 8, 4], strides = [1, 1, 1, 1]} : vector<8x2x9x4xf32> to vector<8x1x8x4xf32>
    %22 = vector.shape_cast %21 : vector<8x1x8x4xf32> to vector<8x8x4xf32>
    %23 = vector.shape_cast %22 : vector<8x8x4xf32> to vector<64x4xf32>
    %24 = vector.extract_strided_slice %17 {offsets = [0, 0, 1, 0], sizes = [8, 1, 8, 4], strides = [1, 1, 1, 1]} : vector<8x2x9x4xf32> to vector<8x1x8x4xf32>
    %25 = vector.shape_cast %24 : vector<8x1x8x4xf32> to vector<8x8x4xf32>
    %26 = vector.shape_cast %25 : vector<8x8x4xf32> to vector<64x4xf32>
    %c1_i32 = arith.constant 1 : i32
    %27 = arith.addi %0, %c1_i32 : i32
    %c0_9 = arith.constant 0 : index
    %c0_10 = arith.constant 0 : index
    %28 = arith.index_cast %27 : i32 to index
    %c0_11 = arith.constant 0 : index
    %c0_12 = arith.constant 0 : index
    %c0_13 = arith.constant 0 : index
    %29 = vector.load %arg2[%c0_9, %c0_10, %28, %c0_11, %c0_12, %c0_13] : memref<1x2x9x2x9x4xf32, #tpu.memory_space<vmem>>, vector<1x1x8x2x9x4xf32>
    %30 = vector.shape_cast %29 : vector<1x1x8x2x9x4xf32> to vector<8x2x9x4xf32>
    %31 = vector.extract_strided_slice %30 {offsets = [0, 0, 0, 0], sizes = [8, 1, 8, 4], strides = [1, 1, 1, 1]} : vector<8x2x9x4xf32> to vector<8x1x8x4xf32>
    %32 = vector.shape_cast %31 : vector<8x1x8x4xf32> to vector<8x8x4xf32>
    %33 = vector.shape_cast %32 : vector<8x8x4xf32> to vector<64x4xf32>
    %34 = vector.extract_strided_slice %30 {offsets = [0, 1, 0, 0], sizes = [8, 1, 8, 4], strides = [1, 1, 1, 1]} : vector<8x2x9x4xf32> to vector<8x1x8x4xf32>
    %35 = vector.shape_cast %34 : vector<8x1x8x4xf32> to vector<8x8x4xf32>
    %36 = vector.shape_cast %35 : vector<8x8x4xf32> to vector<64x4xf32>
    %37 = vector.extract_strided_slice %30 {offsets = [0, 0, 1, 0], sizes = [8, 1, 8, 4], strides = [1, 1, 1, 1]} : vector<8x2x9x4xf32> to vector<8x1x8x4xf32>
    %38 = vector.shape_cast %37 : vector<8x1x8x4xf32> to vector<8x8x4xf32>
    %39 = vector.shape_cast %38 : vector<8x8x4xf32> to vector<64x4xf32>
    %40 = tpu.concatenate %7, %10, %13, %20, %23, %26, %33, %36, %39 in 1 : vector<64x4xf32>, vector<64x4xf32>, vector<64x4xf32>, vector<64x4xf32>, vector<64x4xf32>, vector<64x4xf32>, vector<64x4xf32>, vector<64x4xf32>, vector<64x4xf32> -> vector<64x36xf32>
    %c0_14 = arith.constant 0 : index
    %c0_15 = arith.constant 0 : index
    %41 = vector.load %arg3[%c0_14, %c0_15] : memref<36x128xf32, #tpu.memory_space<vmem>>, vector<36x128xf32>
    %cst = arith.constant dense<0.000000e+00> : vector<64x128xf32>
    %42 = tpu.matmul %40, %41, %cst {dimension_numbers = #tpu.dot_dimension_numbers<[1], [0], [0], [1], [0, 0, 1, 1], [], []>} : vector<64x36xf32>, vector<36x128xf32>, vector<64x128xf32> -> vector<64x128xf32>
    %c0_16 = arith.constant 0 : index
    %c0_17 = arith.constant 0 : index
    %43 = vector.load %arg4[%c0_16, %c0_17] : memref<1x128xf32, #tpu.memory_space<vmem>>, vector<1x128xf32>
    %44 = vector.broadcast %43 : vector<1x128xf32> to vector<64x128xf32>
    %45 = arith.addf %42, %44 : vector<64x128xf32>
    %cst_18 = arith.constant 0.000000e+00 : f32
    %46 = vector.broadcast %cst_18 : f32 to vector<64x128xf32>
    %47 = arith.maximumf %45, %46 : vector<64x128xf32>
    %48 = vector.shape_cast %47 : vector<64x128xf32> to vector<1x8x8x128xf32>
    %c0_19 = arith.constant 0 : index
    %c0_20 = arith.constant 0 : index
    %c0_21 = arith.constant 0 : index
    %c0_22 = arith.constant 0 : index
    %49 = vector.load %arg8[%c0_19, %c0_20, %c0_21, %c0_22] : memref<1x8x8x128xf32, #tpu.memory_space<vmem>>, vector<1x8x8x128xf32>
    tpu.vector_store %arg8[%c0_19, %c0_20, %c0_21, %c0_22], %48 {strides = array<i32>} : memref<1x8x8x128xf32, #tpu.memory_space<vmem>>, vector<1x8x8x128xf32>,
    %c0_23 = arith.constant 0 : index
    %c0_24 = arith.constant 0 : index
    %50 = vector.load %arg5[%c0_23, %c0_24] : memref<128x128xf32, #tpu.memory_space<vmem>>, vector<128x128xf32>
    %cst_25 = arith.constant dense<0.000000e+00> : vector<64x128xf32>
    %51 = tpu.matmul %47, %50, %cst_25 {dimension_numbers = #tpu.dot_dimension_numbers<[1], [0], [0], [1], [0, 0, 1, 1], [], []>} : vector<64x128xf32>, vector<128x128xf32>, vector<64x128xf32> -> vector<64x128xf32>
    %c0_26 = arith.constant 0 : index
    %c0_27 = arith.constant 0 : index
    %52 = vector.load %arg6[%c0_26, %c0_27] : memref<1x128xf32, #tpu.memory_space<vmem>>, vector<1x128xf32>
    %53 = vector.broadcast %52 : vector<1x128xf32> to vector<64x128xf32>
    %54 = arith.addf %51, %53 : vector<64x128xf32>
    %55 = vector.shape_cast %54 : vector<64x128xf32> to vector<1x8x8x128xf32>
    %c0_28 = arith.constant 0 : index
    %c0_29 = arith.constant 0 : index
    %c0_30 = arith.constant 0 : index
    %c0_31 = arith.constant 0 : index
    %56 = vector.load %arg7[%c0_28, %c0_29, %c0_30, %c0_31] : memref<1x8x8x128xf32, #tpu.memory_space<vmem>>, vector<1x8x8x128xf32>
    tpu.vector_store %arg7[%c0_28, %c0_29, %c0_30, %c0_31], %55 {strides = array<i32>} : memref<1x8x8x128xf32, #tpu.memory_space<vmem>>, vector<1x8x8x128xf32>,
    return
  }
  func.func @transform_0(%arg0: i32, %arg1: i32) -> (i32, i32, i32, i32, i32, i32) {
    %c0_i32 = arith.constant 0 : i32
    %c0_i32_0 = arith.constant 0 : i32
    %c0_i32_1 = arith.constant 0 : i32
    %c0_i32_2 = arith.constant 0 : i32
    %c0_i32_3 = arith.constant 0 : i32
    %c0_i32_4 = arith.constant 0 : i32
    return %arg0, %c0_i32, %c0_i32_0, %c0_i32_1, %c0_i32_2, %c0_i32_3 : i32, i32, i32, i32, i32, i32
  }
  func.func @transform_1(%arg0: i32, %arg1: i32) -> (i32, i32) {
    %c0_i32 = arith.constant 0 : i32
    %c0_i32_0 = arith.constant 0 : i32
    %c0_i32_1 = arith.constant 0 : i32
    return %c0_i32, %c0_i32_0 : i32, i32
  }
  func.func @transform_2(%arg0: i32, %arg1: i32) -> (i32, i32) {
    %c0_i32 = arith.constant 0 : i32
    %c0_i32_0 = arith.constant 0 : i32
    %c0_i32_1 = arith.constant 0 : i32
    return %c0_i32, %c0_i32_0 : i32, i32
  }
  func.func @transform_3(%arg0: i32, %arg1: i32) -> (i32, i32) {
    %c0_i32 = arith.constant 0 : i32
    %c0_i32_0 = arith.constant 0 : i32
    %c0_i32_1 = arith.constant 0 : i32
    return %c0_i32, %c0_i32_0 : i32, i32
  }
  func.func @transform_4(%arg0: i32, %arg1: i32) -> (i32, i32) {
    %c0_i32 = arith.constant 0 : i32
    %c0_i32_0 = arith.constant 0 : i32
    %c0_i32_1 = arith.constant 0 : i32
    return %c0_i32, %c0_i32_0 : i32, i32
  }
  func.func @transform_5(%arg0: i32, %arg1: i32) -> (i32, i32, i32, i32) {
    %c0_i32 = arith.constant 0 : i32
    %c0_i32_0 = arith.constant 0 : i32
    %c0_i32_1 = arith.constant 0 : i32
    return %arg0, %arg1, %c0_i32, %c0_i32_0 : i32, i32, i32, i32
  }
  func.func @transform_6(%arg0: i32, %arg1: i32) -> (i32, i32, i32, i32) {
    %c0_i32 = arith.constant 0 : i32
    %c0_i32_0 = arith.constant 0 : i32
    %c0_i32_1 = arith.constant 0 : i32
    return %arg0, %arg1, %c0_i32, %c0_i32_0 : i32, i32, i32, i32
  }
}

</mosaic_0001>

<llo_original>
// kernel: tpu_custom_call.1
$region0: #{tpu_custom_call.1}
  #allocation0 [shape = 'u32[]', space=smem, size = 0x4, offset = 0x4, fixed_abs, tag = 'smem constant byte address 0x4 - core index']
  #allocation1 [shape = 'u32[144,128]{1,0:T(1,128)}', space=vmem, size = 0x12000, scoped, tag = 'internal scratch']
  %s0 = inlined_call_operand.vmem [shape: f32[2,2,9,2,9,4], index: 0, kind: input, shape index: {}]
  %s1 = inlined_call_operand.vmem [shape: f32[36,128], index: 1, kind: input, shape index: {}]
  %s2 = inlined_call_operand.vmem [shape: f32[1,128], index: 2, kind: input, shape index: {}]
  %s3 = inlined_call_operand.vmem [shape: f32[128,128], index: 3, kind: input, shape index: {}]
  %s4 = inlined_call_operand.vmem [shape: f32[1,128], index: 4, kind: input, shape index: {}]
  %s5 = inlined_call_operand.hbm [shape: f32[2,8,8,128], index: 5, kind: output, shape index: {0}]
  %s6 = inlined_call_operand.hbm [shape: f32[2,8,8,128], index: 6, kind: output, shape index: {1}]
  %7 = xla_tuple %s5, %s6
  %s8 = sld [smem:[#allocation0]]
  $region61: #{tpu_custom_call.1} parent=0
    _
  %s10 = ssub.s32 1, %s8
  %s11 = scalar_select 0, %s10, %s8
  $region1: #{tpu_custom_call.1} parent=0
    #allocation2 [shape = 'u8[65536]{0}', space=vmem, size = 0x10000, scoped, tag = 'output window, operand 0']
    #allocation3 [shape = 's32[2]{0}', space=sflag, size = 0x8, scoped, tag = 'scoped memory for tpu_custom_call.1']
    #allocation4 [shape = 'u8[65536]{0}', space=vmem, size = 0x10000, scoped, tag = 'output window, operand 1']
    #allocation5 [shape = 's32[2]{0}', space=sflag, size = 0x8, scoped, tag = 'scoped memory for tpu_custom_call.1']
    %12 = vsyncpa [#allocation3], 0
    %s13 = scalar_lea.sflag [#allocation3], 1
    %14 = vsyncpa %s13, 0
    %15 = vsyncpa [#allocation5], 0
    %s16 = scalar_lea.sflag [#allocation5], 1
    %17 = vsyncpa %s16, 0
    loop: start=0, step=1, limit=4
    $region2: #{tpu_custom_call.1} parent=1 // loop_pre_header
      _
    $region3: #{tpu_custom_call.1} parent=1 // loop_header
      %s19 = sphi 0, %s23
      %p20 = scmp.ge.s32.totalorder %s19, 4
      %s26 = sphi 0, %s38
      %s27 = sphi 0, %s34
      %s28 = sphi 0, %s26
      %s29 = sphi 0, %s27
      %s30 = sphi 0, %s28
      %s31 = sphi 0, %s29
      %s41 = sphi 0, %s43
      %s44 = sphi 0, %s41
      %s45 = sphi 0, %s44
      %s61 = sphi 0, %s45
      %s65 = sphi 0, %s65
      %s67 = sphi 0, %s65
      %s68 = sphi 0, %s67
      %s82 = sphi 0, %s68
      %s86 = sphi 0, %s86
      %s88 = sphi 0, %s86
      %s89 = sphi 0, %s88
      %s103 = sphi 0, %s89
      %s107 = sphi 0, %s107
      %s109 = sphi 0, %s107
      %s110 = sphi 0, %s109
      %s124 = sphi 0, %s110
      %s128 = sphi 0, %s128
      %s130 = sphi 0, %s128
      %s131 = sphi 0, %s130
      %s145 = sphi 0, %s131
      %s153 = sphi 0, %s155
      %s156 = sphi 0, %s153
      %s157 = sphi 0, %s156
      %s173 = sphi 0, %s157
      %s181 = sphi 0, %s183
      %s184 = sphi 0, %s181
      %s185 = sphi 0, %s184
      %s201 = sphi 0, %s185
    $region4: #{tpu_custom_call.1} parent=1 // loop_header_branch
      %22 = sbr.rel (%p20) target = $region8
    $region5: #{tpu_custom_call.1} parent=1 // loop_body
      %s24 = ssub.s32 %s19, 1
      %s25 = ssub.s32 %s19, 2
      %s32 = sadd.s32 1, %s27
      %p33 = scmp.ge.s32.totalorder %s32, 1
      %s34 = scalar_select %p33, 0, %s32
      %s35 = sadd.s32 1, %s26
      %s36 = scalar_select %p33, %s35, %s26
      %p37 = scmp.ge.s32.totalorder %s36, 2
      %s38 = scalar_select %p37, 0, %s36
      %s39 = ssub.s32 %s26, %s38
      %p40 = scmp.eq.s32.totalorder %s39, 0
      %s42 = sadd.s32 %s41, 1
      %s43 = scalar_select %p40, %s41, %s42
      %p46 = pneg %p40
      %p47 = scmp.eq.s32.totalorder %s19, 1
      %p48 = por %p46, %p47
      %p49 = scmp.ne.s32.totalorder %s41, %s44
      %p50 = scmp.eq.s32.totalorder %s19, 0
      %p51 = por %p49, %p50
      %p52 = scmp.ne.s32.totalorder %s41, %s44
      %p53 = scmp.eq.s32.totalorder %s24, 1
      %p54 = por %p52, %p53
      %p55 = scmp.ne.s32.totalorder %s44, %s45
      %p56 = scmp.eq.s32.totalorder %s24, 0
      %p57 = por %p55, %p56
      %p58 = scmp.ne.s32.totalorder %s44, %s45
      %p59 = scmp.eq.s32.totalorder %s25, 1
      %p60 = por %p58, %p59
      %p62 = scmp.ne.s32.totalorder %s45, %s61
      %p63 = scmp.eq.s32.totalorder %s25, 0
      %p64 = por %p62, %p63
      %s66 = sadd.s32 %s65, 1
      %p69 = scmp.eq.s32.totalorder %s19, 1
      %p70 = scmp.ne.s32.totalorder %s65, %s67
      %p71 = scmp.eq.s32.totalorder %s19, 0
      %p72 = por %p70, %p71
      %p73 = scmp.ne.s32.totalorder %s65, %s67
      %p74 = scmp.eq.s32.totalorder %s24, 1
      %p75 = por %p73, %p74
      %p76 = scmp.ne.s32.totalorder %s67, %s68
      %p77 = scmp.eq.s32.totalorder %s24, 0
      %p78 = por %p76, %p77
      %p79 = scmp.ne.s32.totalorder %s67, %s68
      %p80 = scmp.eq.s32.totalorder %s25, 1
      %p81 = por %p79, %p80
      %p83 = scmp.ne.s32.totalorder %s68, %s82
      %p84 = scmp.eq.s32.totalorder %s25, 0
      %p85 = por %p83, %p84
      %s87 = sadd.s32 %s86, 1
      %p90 = scmp.eq.s32.totalorder %s19, 1
      %p91 = scmp.ne.s32.totalorder %s86, %s88
      %p92 = scmp.eq.s32.totalorder %s19, 0
      %p93 = por %p91, %p92
      %p94 = scmp.ne.s32.totalorder %s86, %s88
      %p95 = scmp.eq.s32.totalorder %s24, 1
      %p96 = por %p94, %p95
      %p97 = scmp.ne.s32.totalorder %s88, %s89
      %p98 = scmp.eq.s32.totalorder %s24, 0
      %p99 = por %p97, %p98
      %p100 = scmp.ne.s32.totalorder %s88, %s89
      %p101 = scmp.eq.s32.totalorder %s25, 1
      %p102 = por %p100, %p101
      %p104 = scmp.ne.s32.totalorder %s89, %s103
      %p105 = scmp.eq.s32.totalorder %s25, 0
      %p106 = por %p104, %p105
      %s108 = sadd.s32 %s107, 1
      %p111 = scmp.eq.s32.totalorder %s19, 1
      %p112 = scmp.ne.s32.totalorder %s107, %s109
      %p113 = scmp.eq.s32.totalorder %s19, 0
      %p114 = por %p112, %p113
      %p115 = scmp.ne.s32.totalorder %s107, %s109
      %p116 = scmp.eq.s32.totalorder %s24, 1
      %p117 = por %p115, %p116
      %p118 = scmp.ne.s32.totalorder %s109, %s110
      %p119 = scmp.eq.s32.totalorder %s24, 0
      %p120 = por %p118, %p119
      %p121 = scmp.ne.s32.totalorder %s109, %s110
      %p122 = scmp.eq.s32.totalorder %s25, 1
      %p123 = por %p121, %p122
      %p125 = scmp.ne.s32.totalorder %s110, %s124
      %p126 = scmp.eq.s32.totalorder %s25, 0
      %p127 = por %p125, %p126
      %s129 = sadd.s32 %s128, 1
      %p132 = scmp.eq.s32.totalorder %s19, 1
      %p133 = scmp.ne.s32.totalorder %s128, %s130
      %p134 = scmp.eq.s32.totalorder %s19, 0
      %p135 = por %p133, %p134
      %p136 = scmp.ne.s32.totalorder %s128, %s130
      %p137 = scmp.eq.s32.totalorder %s24, 1
      %p138 = por %p136, %p137
      %p139 = scmp.ne.s32.totalorder %s130, %s131
      %p140 = scmp.eq.s32.totalorder %s24, 0
      %p141 = por %p139, %p140
      %p142 = scmp.ne.s32.totalorder %s130, %s131
      %p143 = scmp.eq.s32.totalorder %s25, 1
      %p144 = por %p142, %p143
      %p146 = scmp.ne.s32.totalorder %s131, %s145
      %p147 = scmp.eq.s32.totalorder %s25, 0
      %p148 = por %p146, %p147
      %s149 = ssub.s32 %s26, %s38
      %s150 = ssub.s32 %s27, %s34
      %s151 = sor.u32 %s149, %s150
      %p152 = scmp.eq.s32.totalorder %s151, 0
      %s154 = sadd.s32 %s153, 1
      %s155 = scalar_select %p152, %s153, %s154
      %p158 = pneg %p152
      %p159 = scmp.eq.s32.totalorder %s19, 1
      %p160 = por %p158, %p159
      %p161 = scmp.ne.s32.totalorder %s153, %s156
      %p162 = scmp.eq.s32.totalorder %s19, 0
      %p163 = por %p161, %p162
      %p164 = scmp.ne.s32.totalorder %s153, %s156
      %p165 = scmp.eq.s32.totalorder %s24, 1
      %p166 = por %p164, %p165
      %p167 = scmp.ne.s32.totalorder %s156, %s157
      %p168 = scmp.eq.s32.totalorder %s24, 0
      %p169 = por %p167, %p168
      %p170 = scmp.ne.s32.totalorder %s156, %s157
      %p171 = scmp.eq.s32.totalorder %s25, 1
      %p172 = por %p170, %p171
      %p174 = scmp.ne.s32.totalorder %s157, %s173
      %p175 = scmp.eq.s32.totalorder %s25, 0
      %p176 = por %p174, %p175
      %s177 = ssub.s32 %s26, %s38
      %s178 = ssub.s32 %s27, %s34
      %s179 = sor.u32 %s177, %s178
      %p180 = scmp.eq.s32.totalorder %s179, 0
      %s182 = sadd.s32 %s181, 1
      %s183 = scalar_select %p180, %s181, %s182
      %p186 = pneg %p180
      %p187 = scmp.eq.s32.totalorder %s19, 1
      %p188 = por %p186, %p187
      %p189 = scmp.ne.s32.totalorder %s181, %s184
      %p190 = scmp.eq.s32.totalorder %s19, 0
      %p191 = por %p189, %p190
      %p192 = scmp.ne.s32.totalorder %s181, %s184
      %p193 = scmp.eq.s32.totalorder %s24, 1
      %p194 = por %p192, %p193
      %p195 = scmp.ne.s32.totalorder %s184, %s185
      %p196 = scmp.eq.s32.totalorder %s24, 0
      %p197 = por %p195, %p196
      %p198 = scmp.ne.s32.totalorder %s184, %s185
      %p199 = scmp.eq.s32.totalorder %s25, 1
      %p200 = por %p198, %p199
      %p202 = scmp.ne.s32.totalorder %s185, %s201
      %p203 = scmp.eq.s32.totalorder %s25, 0
      %p204 = por %p202, %p203
      %p205 = scmp.le.s32.totalorder 1, %s19
      %p206 = scmp.lt.s32.totalorder %s19, 3
      %p207 = pnand %p205, %p206
      %p208 = pneg %p207
      // Predicated region
      $region9: #{tpu_custom_call.1} parent=5 // pred_check
        _
      $region10: #{tpu_custom_call.1} parent=5 // pred_check_branch
        %210 = sbr.rel (%p207) target = $region12
      $region11: #{tpu_custom_call.1} parent=5 // pred_region
        %s211 = ssub.s32 %s19, 1
        // Predicated region
        $region13: #{tpu_custom_call.1} parent=11 // pred_check
          %p212 = pneg %p78
        $region14: #{tpu_custom_call.1} parent=11 // pred_check_branch
          %214 = sbr.rel (%p212) target = $region16
        $region15: #{tpu_custom_call.1} parent=11 // pred_region
          _
        $region16: #{tpu_custom_call.1} parent=11 // pred_fallthru
          _
        // Predicated region
        $region17: #{tpu_custom_call.1} parent=11 // pred_check
          %p215 = pneg %p99
        $region18: #{tpu_custom_call.1} parent=11 // pred_check_branch
          %217 = sbr.rel (%p215) target = $region20
        $region19: #{tpu_custom_call.1} parent=11 // pred_region
          _
        $region20: #{tpu_custom_call.1} parent=11 // pred_fallthru
          _
        // Predicated region
        $region21: #{tpu_custom_call.1} parent=11 // pred_check
          %p218 = pneg %p120
        $region22: #{tpu_custom_call.1} parent=11 // pred_check_branch
          %220 = sbr.rel (%p218) target = $region24
        $region23: #{tpu_custom_call.1} parent=11 // pred_region
          _
        $region24: #{tpu_custom_call.1} parent=11 // pred_fallthru
          _
        // Predicated region
        $region25: #{tpu_custom_call.1} parent=11 // pred_check
          %p221 = pneg %p141
        $region26: #{tpu_custom_call.1} parent=11 // pred_check_branch
          %223 = sbr.rel (%p221) target = $region28
        $region27: #{tpu_custom_call.1} parent=11 // pred_region
          _
        $region28: #{tpu_custom_call.1} parent=11 // pred_fallthru
          _
      $region12: #{tpu_custom_call.1} parent=5 // pred_fallthru
        _
      %p224 = scmp.lt.s32.totalorder %s19, 2
      // Predicated region
      $region29: #{tpu_custom_call.1} parent=5 // pred_check
        %p225 = pneg %p224
      $region30: #{tpu_custom_call.1} parent=5 // pred_check_branch
        %227 = sbr.rel (%p225) target = $region32
      $region31: #{tpu_custom_call.1} parent=5 // pred_region
        // Predicated region
        $region33: #{tpu_custom_call.1} parent=31 // pred_check
          %p228 = pneg %p51
        $region34: #{tpu_custom_call.1} parent=31 // pred_check_branch
          %230 = sbr.rel (%p228) target = $region36
        $region35: #{tpu_custom_call.1} parent=31 // pred_region
          %p231 = scmp.lt.s32.totalorder %s26, 1
          %s232 = scalar_select %p231, %s26, 1
          %s233 = smul.addr %s232, 72
          %s234 = smul.addr %s233, 8
          %s235 = scalar_lea.vmem %s0, %s234
        $region36: #{tpu_custom_call.1} parent=31 // pred_fallthru
          _
      $region32: #{tpu_custom_call.1} parent=5 // pred_fallthru
        _
      %p236 = scmp.le.s32.totalorder 1, %s19
      %p237 = scmp.lt.s32.totalorder %s19, 3
      %p238 = pnand %p236, %p237
      %p239 = pneg %p238
      // Predicated region
      $region37: #{tpu_custom_call.1} parent=5 // pred_check
        _
      $region38: #{tpu_custom_call.1} parent=5 // pred_check_branch
        %241 = sbr.rel (%p238) target = $region40
      $region39: #{tpu_custom_call.1} parent=5 // pred_region
        %s242 = ssub.s32 %s19, 1
        %p243 = scmp.lt.s32.totalorder %s28, 1
        %s244 = scalar_select %p243, %s28, 1
        %s245 = smul.addr %s244, 72
        %s246 = smul.addr %s245, 8
        %s247 = scalar_lea.vmem %s0, %s246
        %p248 = pneg %p57
        %p249 = pneg %p54
        %p250 = pneg %p78
        %p251 = pneg %p75
        %p252 = pneg %p99
        %p253 = pneg %p96
        %p254 = pneg %p120
        %p255 = pneg %p117
        %p256 = pneg %p141
        %p257 = pneg %p138
        %p258 = pneg %p169
        %p259 = pneg %p166
        %s260 = sand.u32 %s156, 1
        %s261 = scalar_lea.sflag [#allocation3], %s260
        %s262 = sand.u32 %s156, 1
        %s263 = smul.addr %s262, 64
        %s264 = scalar_lea.vmem [#allocation2], %s263
        %p265 = pneg %p197
        %p266 = pneg %p194
        %s267 = sand.u32 %s184, 1
        %s268 = scalar_lea.sflag [#allocation5], %s267
        %s269 = sand.u32 %s184, 1
        %s270 = smul.addr %s269, 64
        %s271 = scalar_lea.vmem [#allocation4], %s270
        %p272 = scmp.lt.s32.totalorder %s28, 1
        %s273 = scalar_select %p272, %s28, 1
        %s274 = smul.addr %s273, 72
        %s275 = smul.addr %s274, 8
        %s276 = scalar_lea.vmem %s0, %s275
        %s277 = smul.u32 8, %s29
        %s278 = smul.u32 8, %s29
        %s279 = smul.u32 %s29, 8
        %s280 = smul.u32 %s279, 32
        %s281 = scalar_lea.vmem %s276, %s280
        %v282 = vld [vmem:[%s281] sm:$0xff]
        %v283 = vld [vmem:[%s281 + $0x8] sm:$0x1]
        %v284 = vld [vmem:[%s281 + $0x10] sm:$0xff]
        %v285 = vld [vmem:[%s281 + $0x20] sm:$0xff]
        %v286 = vld [vmem:[%s281 + $0x28] sm:$0x1]
        %v287 = vld [vmem:[%s281 + $0x30] sm:$0xff]
        %v288 = vld [vmem:[%s281 + $0x40] sm:$0xff]
        %v289 = vld [vmem:[%s281 + $0x48] sm:$0x1]
        %v290 = vld [vmem:[%s281 + $0x50] sm:$0xff]
        %v291 = vld [vmem:[%s281 + $0x60] sm:$0xff]
        %v292 = vld [vmem:[%s281 + $0x68] sm:$0x1]
        %v293 = vld [vmem:[%s281 + $0x70] sm:$0xff]
        %v294 = vld [vmem:[%s281 + $0x80] sm:$0xff]
        %v295 = vld [vmem:[%s281 + $0x88] sm:$0x1]
        %v296 = vld [vmem:[%s281 + $0x90] sm:$0xff]
        %v297 = vld [vmem:[%s281 + $0xa0] sm:$0xff]
        %v298 = vld [vmem:[%s281 + $0xa8] sm:$0x1]
        %v299 = vld [vmem:[%s281 + $0xb0] sm:$0xff]
        %v300 = vld [vmem:[%s281 + $0xc0] sm:$0xff]
        %v301 = vld [vmem:[%s281 + $0xc8] sm:$0x1]
        %v302 = vld [vmem:[%s281 + $0xd0] sm:$0xff]
        %v303 = vld [vmem:[%s281 + $0xe0] sm:$0xff]
        %v304 = vld [vmem:[%s281 + $0xe8] sm:$0x1]
        %v305 = vld [vmem:[%s281 + $0xf0] sm:$0xff]
        %vm322 = vcmask 1046528
        %v323 = vrot.slane %v282, 1
        %v324 = vrot.slane %v283, 1
        %v325 = vsel %vm322, %v323, %v324
        %v326 = vrot.slane %v285, 1
        %v327 = vrot.slane %v286, 1
        %v328 = vsel %vm322, %v326, %v327
        %v329 = vrot.slane %v288, 1
        %v330 = vrot.slane %v289, 1
        %v331 = vsel %vm322, %v329, %v330
        %v332 = vrot.slane %v291, 1
        %v333 = vrot.slane %v292, 1
        %v334 = vsel %vm322, %v332, %v333
        %v335 = vrot.slane %v294, 1
        %v336 = vrot.slane %v295, 1
        %v337 = vsel %vm322, %v335, %v336
        %v338 = vrot.slane %v297, 1
        %v339 = vrot.slane %v298, 1
        %v340 = vsel %vm322, %v338, %v339
        %v341 = vrot.slane %v300, 1
        %v342 = vrot.slane %v301, 1
        %v343 = vsel %vm322, %v341, %v342
        %v344 = vrot.slane %v303, 1
        %v345 = vrot.slane %v304, 1
        %v346 = vsel %vm322, %v344, %v345
        %s347 = sadd.s32 %s280, 288
        %s348 = scalar_lea.vmem %s276, %s347
        %v349 = vld [vmem:[%s348] sm:$0xff]
        %v350 = vld [vmem:[%s348 + $0x8] sm:$0x1]
        %v351 = vld [vmem:[%s348 + $0x10] sm:$0xff]
        %v352 = vld [vmem:[%s348 + $0x20] sm:$0xff]
        %v353 = vld [vmem:[%s348 + $0x28] sm:$0x1]
        %v354 = vld [vmem:[%s348 + $0x30] sm:$0xff]
        %v355 = vld [vmem:[%s348 + $0x40] sm:$0xff]
        %v356 = vld [vmem:[%s348 + $0x48] sm:$0x1]
        %v357 = vld [vmem:[%s348 + $0x50] sm:$0xff]
        %v358 = vld [vmem:[%s348 + $0x60] sm:$0xff]
        %v359 = vld [vmem:[%s348 + $0x68] sm:$0x1]
        %v360 = vld [vmem:[%s348 + $0x70] sm:$0xff]
        %v361 = vld [vmem:[%s348 + $0x80] sm:$0xff]
        %v362 = vld [vmem:[%s348 + $0x88] sm:$0x1]
        %v363 = vld [vmem:[%s348 + $0x90] sm:$0xff]
        %v364 = vld [vmem:[%s348 + $0xa0] sm:$0xff]
        %v365 = vld [vmem:[%s348 + $0xa8] sm:$0x1]
        %v366 = vld [vmem:[%s348 + $0xb0] sm:$0xff]
        %v367 = vld [vmem:[%s348 + $0xc0] sm:$0xff]
        %v368 = vld [vmem:[%s348 + $0xc8] sm:$0x1]
        %v369 = vld [vmem:[%s348 + $0xd0] sm:$0xff]
        %v370 = vld [vmem:[%s348 + $0xe0] sm:$0xff]
        %v371 = vld [vmem:[%s348 + $0xe8] sm:$0x1]
        %v372 = vld [vmem:[%s348 + $0xf0] sm:$0xff]
        %v389 = vrot.slane %v349, 1
        %v390 = vrot.slane %v350, 1
        %v391 = vsel %vm322, %v389, %v390
        %v392 = vrot.slane %v352, 1
        %v393 = vrot.slane %v353, 1
        %v394 = vsel %vm322, %v392, %v393
        %v395 = vrot.slane %v355, 1
        %v396 = vrot.slane %v356, 1
        %v397 = vsel %vm322, %v395, %v396
        %v398 = vrot.slane %v358, 1
        %v399 = vrot.slane %v359, 1
        %v400 = vsel %vm322, %v398, %v399
        %v401 = vrot.slane %v361, 1
        %v402 = vrot.slane %v362, 1
        %v403 = vsel %vm322, %v401, %v402
        %v404 = vrot.slane %v364, 1
        %v405 = vrot.slane %v365, 1
        %v406 = vsel %vm322, %v404, %v405
        %v407 = vrot.slane %v367, 1
        %v408 = vrot.slane %v368, 1
        %v409 = vsel %vm322, %v407, %v408
        %v410 = vrot.slane %v370, 1
        %v411 = vrot.slane %v371, 1
        %v412 = vsel %vm322, %v410, %v411
        %s413 = sadd.s32 %s279, 1
        %s414 = smul.u32 %s413, 32
        %s415 = scalar_lea.vmem %s276, %s414
        %v416 = vld [vmem:[%s415] sm:$0xff]
        %v417 = vld [vmem:[%s415 + $0x8] sm:$0x1]
        %v418 = vld [vmem:[%s415 + $0x10] sm:$0xff]
        %v419 = vld [vmem:[%s415 + $0x20] sm:$0xff]
        %v420 = vld [vmem:[%s415 + $0x28] sm:$0x1]
        %v421 = vld [vmem:[%s415 + $0x30] sm:$0xff]
        %v422 = vld [vmem:[%s415 + $0x40] sm:$0xff]
        %v423 = vld [vmem:[%s415 + $0x48] sm:$0x1]
        %v424 = vld [vmem:[%s415 + $0x50] sm:$0xff]
        %v425 = vld [vmem:[%s415 + $0x60] sm:$0xff]
        %v426 = vld [vmem:[%s415 + $0x68] sm:$0x1]
        %v427 = vld [vmem:[%s415 + $0x70] sm:$0xff]
        %v428 = vld [vmem:[%s415 + $0x80] sm:$0xff]
        %v429 = vld [vmem:[%s415 + $0x88] sm:$0x1]
        %v430 = vld [vmem:[%s415 + $0x90] sm:$0xff]
        %v431 = vld [vmem:[%s415 + $0xa0] sm:$0xff]
        %v432 = vld [vmem:[%s415 + $0xa8] sm:$0x1]
        %v433 = vld [vmem:[%s415 + $0xb0] sm:$0xff]
        %v434 = vld [vmem:[%s415 + $0xc0] sm:$0xff]
        %v435 = vld [vmem:[%s415 + $0xc8] sm:$0x1]
        %v436 = vld [vmem:[%s415 + $0xd0] sm:$0xff]
        %v437 = vld [vmem:[%s415 + $0xe0] sm:$0xff]
        %v438 = vld [vmem:[%s415 + $0xe8] sm:$0x1]
        %v439 = vld [vmem:[%s415 + $0xf0] sm:$0xff]
        %v456 = vrot.slane %v416, 1
        %v457 = vrot.slane %v417, 1
        %v458 = vsel %vm322, %v456, %v457
        %v459 = vrot.slane %v419, 1
        %v460 = vrot.slane %v420, 1
        %v461 = vsel %vm322, %v459, %v460
        %v462 = vrot.slane %v422, 1
        %v463 = vrot.slane %v423, 1
        %v464 = vsel %vm322, %v462, %v463
        %v465 = vrot.slane %v425, 1
        %v466 = vrot.slane %v426, 1
        %v467 = vsel %vm322, %v465, %v466
        %v468 = vrot.slane %v428, 1
        %v469 = vrot.slane %v429, 1
        %v470 = vsel %vm322, %v468, %v469
        %v471 = vrot.slane %v431, 1
        %v472 = vrot.slane %v432, 1
        %v473 = vsel %vm322, %v471, %v472
        %v474 = vrot.slane %v434, 1
        %v475 = vrot.slane %v435, 1
        %v476 = vsel %vm322, %v474, %v475
        %v477 = vrot.slane %v437, 1
        %v478 = vrot.slane %v438, 1
        %v479 = vsel %vm322, %v477, %v478
        %488 = vrot.lane.b32.xlu0 %v284, 4
        %v489 = vpop.permute.xlu0 %488
        %490 = vrot.lane.b32.xlu0 %v287, 4
        %v491 = vpop.permute.xlu0 %490
        %492 = vrot.lane.b32.xlu0 %v290, 4
        %v493 = vpop.permute.xlu0 %492
        %494 = vrot.lane.b32.xlu0 %v293, 4
        %v495 = vpop.permute.xlu0 %494
        %496 = vrot.lane.b32.xlu0 %v296, 4
        %v497 = vpop.permute.xlu0 %496
        %498 = vrot.lane.b32.xlu0 %v299, 4
        %v499 = vpop.permute.xlu0 %498
        %500 = vrot.lane.b32.xlu0 %v302, 4
        %v501 = vpop.permute.xlu0 %500
        %502 = vrot.lane.b32.xlu0 %v305, 4
        %v503 = vpop.permute.xlu0 %502
        %512 = vrot.lane.b32.xlu0 %v325, 8
        %v513 = vpop.permute.xlu0 %512
        %514 = vrot.lane.b32.xlu0 %v328, 8
        %v515 = vpop.permute.xlu0 %514
        %516 = vrot.lane.b32.xlu0 %v331, 8
        %v517 = vpop.permute.xlu0 %516
        %518 = vrot.lane.b32.xlu0 %v334, 8
        %v519 = vpop.permute.xlu0 %518
        %520 = vrot.lane.b32.xlu0 %v337, 8
        %v521 = vpop.permute.xlu0 %520
        %522 = vrot.lane.b32.xlu0 %v340, 8
        %v523 = vpop.permute.xlu0 %522
        %524 = vrot.lane.b32.xlu0 %v343, 8
        %v525 = vpop.permute.xlu0 %524
        %526 = vrot.lane.b32.xlu0 %v346, 8
        %v527 = vpop.permute.xlu0 %526
        %536 = vrot.lane.b32.xlu0 %v349, 12
        %v537 = vpop.permute.xlu0 %536
        %538 = vrot.lane.b32.xlu0 %v352, 12
        %v539 = vpop.permute.xlu0 %538
        %540 = vrot.lane.b32.xlu0 %v355, 12
        %v541 = vpop.permute.xlu0 %540
        %542 = vrot.lane.b32.xlu0 %v358, 12
        %v543 = vpop.permute.xlu0 %542
        %544 = vrot.lane.b32.xlu0 %v361, 12
        %v545 = vpop.permute.xlu0 %544
        %546 = vrot.lane.b32.xlu0 %v364, 12
        %v547 = vpop.permute.xlu0 %546
        %548 = vrot.lane.b32.xlu0 %v367, 12
        %v549 = vpop.permute.xlu0 %548
        %550 = vrot.lane.b32.xlu0 %v370, 12
        %v551 = vpop.permute.xlu0 %550
        %568 = vrot.lane.b32.xlu0 %v351, 16
        %v569 = vpop.permute.xlu0 %568
        %570 = vrot.lane.b32.xlu0 %v354, 16
        %v571 = vpop.permute.xlu0 %570
        %572 = vrot.lane.b32.xlu0 %v357, 16
        %v573 = vpop.permute.xlu0 %572
        %574 = vrot.lane.b32.xlu0 %v360, 16
        %v575 = vpop.permute.xlu0 %574
        %576 = vrot.lane.b32.xlu0 %v363, 16
        %v577 = vpop.permute.xlu0 %576
        %578 = vrot.lane.b32.xlu0 %v366, 16
        %v579 = vpop.permute.xlu0 %578
        %580 = vrot.lane.b32.xlu0 %v369, 16
        %v581 = vpop.permute.xlu0 %580
        %582 = vrot.lane.b32.xlu0 %v372, 16
        %v583 = vpop.permute.xlu0 %582
        %592 = vrot.lane.b32.xlu0 %v391, 20
        %v593 = vpop.permute.xlu0 %592
        %594 = vrot.lane.b32.xlu0 %v394, 20
        %v595 = vpop.permute.xlu0 %594
        %596 = vrot.lane.b32.xlu0 %v397, 20
        %v597 = vpop.permute.xlu0 %596
        %598 = vrot.lane.b32.xlu0 %v400, 20
        %v599 = vpop.permute.xlu0 %598
        %600 = vrot.lane.b32.xlu0 %v403, 20
        %v601 = vpop.permute.xlu0 %600
        %602 = vrot.lane.b32.xlu0 %v406, 20
        %v603 = vpop.permute.xlu0 %602
        %604 = vrot.lane.b32.xlu0 %v409, 20
        %v605 = vpop.permute.xlu0 %604
        %606 = vrot.lane.b32.xlu0 %v412, 20
        %v607 = vpop.permute.xlu0 %606
        %616 = vrot.lane.b32.xlu0 %v416, 24
        %v617 = vpop.permute.xlu0 %616
        %618 = vrot.lane.b32.xlu0 %v419, 24
        %v619 = vpop.permute.xlu0 %618
        %620 = vrot.lane.b32.xlu0 %v422, 24
        %v621 = vpop.permute.xlu0 %620
        %622 = vrot.lane.b32.xlu0 %v425, 24
        %v623 = vpop.permute.xlu0 %622
        %624 = vrot.lane.b32.xlu0 %v428, 24
        %v625 = vpop.permute.xlu0 %624
        %626 = vrot.lane.b32.xlu0 %v431, 24
        %v627 = vpop.permute.xlu0 %626
        %628 = vrot.lane.b32.xlu0 %v434, 24
        %v629 = vpop.permute.xlu0 %628
        %630 = vrot.lane.b32.xlu0 %v437, 24
        %v631 = vpop.permute.xlu0 %630
        %648 = vrot.lane.b32.xlu0 %v418, 28
        %v649 = vpop.permute.xlu0 %648
        %650 = vrot.lane.b32.xlu0 %v421, 28
        %v651 = vpop.permute.xlu0 %650
        %652 = vrot.lane.b32.xlu0 %v424, 28
        %v653 = vpop.permute.xlu0 %652
        %654 = vrot.lane.b32.xlu0 %v427, 28
        %v655 = vpop.permute.xlu0 %654
        %656 = vrot.lane.b32.xlu0 %v430, 28
        %v657 = vpop.permute.xlu0 %656
        %658 = vrot.lane.b32.xlu0 %v433, 28
        %v659 = vpop.permute.xlu0 %658
        %660 = vrot.lane.b32.xlu0 %v436, 28
        %v661 = vpop.permute.xlu0 %660
        %662 = vrot.lane.b32.xlu0 %v439, 28
        %v663 = vpop.permute.xlu0 %662
        %672 = vrot.lane.b32.xlu0 %v458, 32
        %v673 = vpop.permute.xlu0 %672
        %674 = vrot.lane.b32.xlu0 %v461, 32
        %v675 = vpop.permute.xlu0 %674
        %676 = vrot.lane.b32.xlu0 %v464, 32
        %v677 = vpop.permute.xlu0 %676
        %678 = vrot.lane.b32.xlu0 %v467, 32
        %v679 = vpop.permute.xlu0 %678
        %680 = vrot.lane.b32.xlu0 %v470, 32
        %v681 = vpop.permute.xlu0 %680
        %682 = vrot.lane.b32.xlu0 %v473, 32
        %v683 = vpop.permute.xlu0 %682
        %684 = vrot.lane.b32.xlu0 %v476, 32
        %v685 = vpop.permute.xlu0 %684
        %686 = vrot.lane.b32.xlu0 %v479, 32
        %v687 = vpop.permute.xlu0 %686
        %vm696 = vcmask 31744
        %v697 = vsel %vm696, %v282, %v489
        %v698 = vsel %vm696, %v285, %v491
        %v699 = vsel %vm696, %v288, %v493
        %v700 = vsel %vm696, %v291, %v495
        %v701 = vsel %vm696, %v294, %v497
        %v702 = vsel %vm696, %v297, %v499
        %v703 = vsel %vm696, %v300, %v501
        %v704 = vsel %vm696, %v303, %v503
        %vm705 = vcmask 64512
        %v706 = vsel %vm705, %v697, %v513
        %v707 = vsel %vm705, %v698, %v515
        %v708 = vsel %vm705, %v699, %v517
        %v709 = vsel %vm705, %v700, %v519
        %v710 = vsel %vm705, %v701, %v521
        %v711 = vsel %vm705, %v702, %v523
        %v712 = vsel %vm705, %v703, %v525
        %v713 = vsel %vm705, %v704, %v527
        %vm714 = vcmask 97280
        %v715 = vsel %vm714, %v706, %v537
        %v716 = vsel %vm714, %v707, %v539
        %v717 = vsel %vm714, %v708, %v541
        %v718 = vsel %vm714, %v709, %v543
        %v719 = vsel %vm714, %v710, %v545
        %v720 = vsel %vm714, %v711, %v547
        %v721 = vsel %vm714, %v712, %v549
        %v722 = vsel %vm714, %v713, %v551
        %vm723 = vcmask 130048
        %v724 = vsel %vm723, %v715, %v569
        %v725 = vsel %vm723, %v716, %v571
        %v726 = vsel %vm723, %v717, %v573
        %v727 = vsel %vm723, %v718, %v575
        %v728 = vsel %vm723, %v719, %v577
        %v729 = vsel %vm723, %v720, %v579
        %v730 = vsel %vm723, %v721, %v581
        %v731 = vsel %vm723, %v722, %v583
        %vm732 = vcmask 162816
        %v733 = vsel %vm732, %v724, %v593
        %v734 = vsel %vm732, %v725, %v595
        %v735 = vsel %vm732, %v726, %v597
        %v736 = vsel %vm732, %v727, %v599
        %v737 = vsel %vm732, %v728, %v601
        %v738 = vsel %vm732, %v729, %v603
        %v739 = vsel %vm732, %v730, %v605
        %v740 = vsel %vm732, %v731, %v607
        %vm741 = vcmask 195584
        %v742 = vsel %vm741, %v733, %v617
        %v743 = vsel %vm741, %v734, %v619
        %v744 = vsel %vm741, %v735, %v621
        %v745 = vsel %vm741, %v736, %v623
        %v746 = vsel %vm741, %v737, %v625
        %v747 = vsel %vm741, %v738, %v627
        %v748 = vsel %vm741, %v739, %v629
        %v749 = vsel %vm741, %v740, %v631
        %vm750 = vcmask 228352
        %v751 = vsel %vm750, %v742, %v649
        %v752 = vsel %vm750, %v743, %v651
        %v753 = vsel %vm750, %v744, %v653
        %v754 = vsel %vm750, %v745, %v655
        %v755 = vsel %vm750, %v746, %v657
        %v756 = vsel %vm750, %v747, %v659
        %v757 = vsel %vm750, %v748, %v661
        %v758 = vsel %vm750, %v749, %v663
        %vm759 = vcmask 261120
        %v760 = vsel %vm759, %v751, %v673
        %v761 = vsel %vm759, %v752, %v675
        %v762 = vsel %vm759, %v753, %v677
        %v763 = vsel %vm759, %v754, %v679
        %v764 = vsel %vm759, %v755, %v681
        %v765 = vsel %vm759, %v756, %v683
        %v766 = vsel %vm759, %v757, %v685
        %v767 = vsel %vm759, %v758, %v687
        %v768 = vld [vmem:[%s1] sm:$0xff]
        %v769 = vld [vmem:[%s1 + $0x8] sm:$0xff]
        %v770 = vld [vmem:[%s1 + $0x10] sm:$0xff]
        %v771 = vld [vmem:[%s1 + $0x18] sm:$0xff]
        %v772 = vld [vmem:[%s1 + $0x20] sm:$0xf]
        %v773 = vld [vmem:[%s2] sm:$0x1]
        %v775 = vlaneseq
        %v776 = vshrl.u32 %v775, 7
        %v777 = vsub.s32 0, %v776
        %v778 = vrot.slane %v773, %v777
        %vm780 = vcmask 293888
        %v782 = vsel %vm780, %v760, 0
        %v785 = vsel %vm780, %v761, 0
        %v788 = vsel %vm780, %v762, 0
        %v791 = vsel %vm780, %v763, 0
        %v794 = vsel %vm780, %v764, 0
        %v797 = vsel %vm780, %v765, 0
        %v800 = vsel %vm780, %v766, 0
        %v803 = vsel %vm780, %v767, 0
        %vm805 = vcmask 1043456
        %v807 = vsel %vm805, %v772, 0
        %809 = vmatprep.subr.mxu0 0.0
        %810 = vmatpush1.msra.mxu0 %v768
        %811 = vmatprep.subr.mxu0 0.0
        %812 = vmatpush1.msra.mxu0 %v769
        %813 = vmatprep.subr.mxu0 0.0
        %814 = vmatpush1.msra.mxu0 %v770
        %815 = vmatprep.subr.mxu0 0.0
        %816 = vmatpush1.msra.mxu0 %v771
        %817 = vmatprep.subr.mxu0 0.0
        %818 = vmatpush1.msra.mxu0 %v807
        %819 = vmatprep.subr.mxu0 0.0
        %820 = vmatpush1.msra.mxu0 0.0
        %821 = vmatprep.subr.mxu0 0.0
        %822 = vmatpush1.msra.mxu0 0.0
        %823 = vmatprep.subr.mxu0 0.0
        %824 = vmatpush1.msra.mxu0 0.0
        %825 = vmatprep.subr.mxu0 0.0
        %826 = vmatpush1.msra.mxu0 0.0
        %827 = vmatprep.subr.mxu0 0.0
        %828 = vmatpush1.msra.mxu0 0.0
        %829 = vmatprep.subr.mxu0 0.0
        %830 = vmatpush1.msra.mxu0 0.0
        %831 = vmatprep.subr.mxu0 0.0
        %832 = vmatpush1.msra.mxu0 0.0
        %833 = vmatprep.subr.mxu0 0.0
        %834 = vmatpush1.msra.mxu0 0.0
        %835 = vmatprep.subr.mxu0 0.0
        %836 = vmatpush1.msra.mxu0 0.0
        %837 = vmatprep.subr.mxu0 0.0
        %838 = vmatpush1.msra.mxu0 0.0
        %839 = vmatprep.subr.mxu0 0.0
        %840 = vmatpush1.msra.mxu0 0.0
        %841 = vmatprep.subr.mxu0 0.0
        %842 = vmatpush1.msra.mxu0 0.0
        %843 = vmatprep.subr.mxu0 0.0
        %844 = vmatpush1.msra.mxu0 0.0
        %845 = vmatprep.subr.mxu0 0.0
        %846 = vmatpush1.msra.mxu0 0.0
        %847 = vmatprep.subr.mxu0 0.0
        %848 = vmatpush1.msra.mxu0 0.0
        %849 = vmatprep.subr.mxu0 0.0
        %850 = vmatpush1.msra.mxu0 0.0
        %851 = vmatprep.subr.mxu0 0.0
        %852 = vmatpush1.msra.mxu0 0.0
        %853 = vmatprep.subr.mxu0 0.0
        %854 = vmatpush1.msra.mxu0 0.0
        %855 = vmatprep.subr.mxu0 0.0
        %856 = vmatpush1.msra.mxu0 0.0
        %857 = vmatprep.subr.mxu0 0.0
        %858 = vmatpush1.msra.mxu0 0.0
        %859 = vmatprep.subr.mxu0 0.0
        %860 = vmatpush1.msra.mxu0 0.0
        %861 = vmatprep.subr.mxu0 0.0
        %862 = vmatpush1.msra.mxu0 0.0
        %863 = vmatprep.subr.mxu0 0.0
        %864 = vmatpush1.msra.mxu0 0.0
        %865 = vmatprep.subr.mxu0 0.0
        %866 = vmatpush1.msra.mxu0 0.0
        %867 = vmatprep.subr.mxu0 0.0
        %868 = vmatpush1.msra.mxu0 0.0
        %869 = vmatprep.subr.mxu0 0.0
        %870 = vmatpush1.msra.mxu0 0.0
        %871 = vmatprep.subr.mxu0 0.0
        %872 = vmatpush1.msra.mxu0 0.0
        %873 = vmatprep.mubr.f32.mxu0 0.0
        %874 = vmatmul.mubr.f32.gmra.mrb[0].mxu0 %v782
        %v875 = vpop.f32.mrb[0].mxu0
        %v876 = vadd.f32 %v778, %v875
        %v877 = vpop.f32.mrb[0].mxu0
        %878 = vmatprep.mubr.f32.mxu0 0.0
        %879 = vmatmul.mubr.f32.gmra.mrb[0].mxu0 %v785
        %v880 = vpop.f32.mrb[0].mxu0
        %v881 = vadd.f32 %v778, %v880
        %v882 = vpop.f32.mrb[0].mxu0
        %883 = vmatprep.mubr.f32.mxu0 0.0
        %884 = vmatmul.mubr.f32.gmra.mrb[0].mxu0 %v788
        %v885 = vpop.f32.mrb[0].mxu0
        %v886 = vadd.f32 %v778, %v885
        %v887 = vpop.f32.mrb[0].mxu0
        %888 = vmatprep.mubr.f32.mxu0 0.0
        %889 = vmatmul.mubr.f32.gmra.mrb[0].mxu0 %v791
        %v890 = vpop.f32.mrb[0].mxu0
        %v891 = vadd.f32 %v778, %v890
        %v892 = vpop.f32.mrb[0].mxu0
        %893 = vmatprep.mubr.f32.mxu0 0.0
        %894 = vmatmul.mubr.f32.gmra.mrb[0].mxu0 %v794
        %v895 = vpop.f32.mrb[0].mxu0
        %v896 = vadd.f32 %v778, %v895
        %v897 = vpop.f32.mrb[0].mxu0
        %898 = vmatprep.mubr.f32.mxu0 0.0
        %899 = vmatmul.mubr.f32.gmra.mrb[0].mxu0 %v797
        %v900 = vpop.f32.mrb[0].mxu0
        %v901 = vadd.f32 %v778, %v900
        %v902 = vpop.f32.mrb[0].mxu0
        %903 = vmatprep.mubr.f32.mxu0 0.0
        %904 = vmatmul.mubr.f32.gmra.mrb[0].mxu0 %v800
        %v905 = vpop.f32.mrb[0].mxu0
        %v906 = vadd.f32 %v778, %v905
        %v907 = vpop.f32.mrb[0].mxu0
        %908 = vmatprep.mubr.f32.mxu0 0.0
        %909 = vmatmul.mubr.f32.gmra.mrb[0].mxu0 %v803
        %v910 = vpop.f32.mrb[0].mxu0
        %v911 = vadd.f32 %v778, %v910
        %v912 = vpop.f32.mrb[0].mxu0
        %913 = vdwg.mxu0
        %v914 = vmax.f32 %v876, 0.0
        %v915 = vmax.f32 %v881, 0.0
        %v916 = vmax.f32 %v886, 0.0
        %v917 = vmax.f32 %v891, 0.0
        %v918 = vmax.f32 %v896, 0.0
        %v919 = vmax.f32 %v901, 0.0
        %v920 = vmax.f32 %v906, 0.0
        %v921 = vmax.f32 %v911, 0.0
        %922 = vst [vmem:[%s271] sm:$0xff] %v914
        %923 = vst [vmem:[%s271 + $0x8] sm:$0xff] %v915
        %924 = vst [vmem:[%s271 + $0x10] sm:$0xff] %v916
        %925 = vst [vmem:[%s271 + $0x18] sm:$0xff] %v917
        %926 = vst [vmem:[%s271 + $0x20] sm:$0xff] %v918
        %927 = vst [vmem:[%s271 + $0x28] sm:$0xff] %v919
        %928 = vst [vmem:[%s271 + $0x30] sm:$0xff] %v920
        %929 = vst [vmem:[%s271 + $0x38] sm:$0xff] %v921
        %v930 = vld [vmem:[%s3] sm:$0xff]
        %v931 = vld [vmem:[%s3 + $0x8] sm:$0xff]
        %v932 = vld [vmem:[%s3 + $0x10] sm:$0xff]
        %v933 = vld [vmem:[%s3 + $0x18] sm:$0xff]
        %v934 = vld [vmem:[%s3 + $0x20] sm:$0xff]
        %v935 = vld [vmem:[%s3 + $0x28] sm:$0xff]
        %v936 = vld [vmem:[%s3 + $0x30] sm:$0xff]
        %v937 = vld [vmem:[%s3 + $0x38] sm:$0xff]
        %v938 = vld [vmem:[%s3 + $0x40] sm:$0xff]
        %v939 = vld [vmem:[%s3 + $0x48] sm:$0xff]
        %v940 = vld [vmem:[%s3 + $0x50] sm:$0xff]
        %v941 = vld [vmem:[%s3 + $0x58] sm:$0xff]
        %v942 = vld [vmem:[%s3 + $0x60] sm:$0xff]
        %v943 = vld [vmem:[%s3 + $0x68] sm:$0xff]
        %v944 = vld [vmem:[%s3 + $0x70] sm:$0xff]
        %v945 = vld [vmem:[%s3 + $0x78] sm:$0xff]
        %v946 = vld [vmem:[%s4] sm:$0x1]
        %v948 = vlaneseq
        %v949 = vshrl.u32 %v948, 7
        %v950 = vsub.s32 0, %v949
        %v951 = vrot.slane %v946, %v950
        %953 = vmatprep.subr.mxu0 0.0
        %954 = vmatpush1.msra.mxu0 %v930
        %955 = vmatprep.subr.mxu0 0.0
        %956 = vmatpush1.msra.mxu0 %v931
        %957 = vmatprep.subr.mxu0 0.0
        %958 = vmatpush1.msra.mxu0 %v932
        %959 = vmatprep.subr.mxu0 0.0
        %960 = vmatpush1.msra.mxu0 %v933
        %961 = vmatprep.subr.mxu0 0.0
        %962 = vmatpush1.msra.mxu0 %v934
        %963 = vmatprep.subr.mxu0 0.0
        %964 = vmatpush1.msra.mxu0 %v935
        %965 = vmatprep.subr.mxu0 0.0
        %966 = vmatpush1.msra.mxu0 %v936
        %967 = vmatprep.subr.mxu0 0.0
        %968 = vmatpush1.msra.mxu0 %v937
        %969 = vmatprep.subr.mxu0 0.0
        %970 = vmatpush1.msra.mxu0 %v938
        %971 = vmatprep.subr.mxu0 0.0
        %972 = vmatpush1.msra.mxu0 %v939
        %973 = vmatprep.subr.mxu0 0.0
        %974 = vmatpush1.msra.mxu0 %v940
        %975 = vmatprep.subr.mxu0 0.0
        %976 = vmatpush1.msra.mxu0 %v941
        %977 = vmatprep.subr.mxu0 0.0
        %978 = vmatpush1.msra.mxu0 %v942
        %979 = vmatprep.subr.mxu0 0.0
        %980 = vmatpush1.msra.mxu0 %v943
        %981 = vmatprep.subr.mxu0 0.0
        %982 = vmatpush1.msra.mxu0 %v944
        %983 = vmatprep.subr.mxu0 0.0
        %984 = vmatpush1.msra.mxu0 %v945
        %985 = vmatprep.subr.mxu0 0.0
        %986 = vmatpush1.msra.mxu0 0.0
        %987 = vmatprep.subr.mxu0 0.0
        %988 = vmatpush1.msra.mxu0 0.0
        %989 = vmatprep.subr.mxu0 0.0
        %990 = vmatpush1.msra.mxu0 0.0
        %991 = vmatprep.subr.mxu0 0.0
        %992 = vmatpush1.msra.mxu0 0.0
        %993 = vmatprep.subr.mxu0 0.0
        %994 = vmatpush1.msra.mxu0 0.0
        %995 = vmatprep.subr.mxu0 0.0
        %996 = vmatpush1.msra.mxu0 0.0
        %997 = vmatprep.subr.mxu0 0.0
        %998 = vmatpush1.msra.mxu0 0.0
        %999 = vmatprep.subr.mxu0 0.0
        %1000 = vmatpush1.msra.mxu0 0.0
        %1001 = vmatprep.subr.mxu0 0.0
        %1002 = vmatpush1.msra.mxu0 0.0
        %1003 = vmatprep.subr.mxu0 0.0
        %1004 = vmatpush1.msra.mxu0 0.0
        %1005 = vmatprep.subr.mxu0 0.0
        %1006 = vmatpush1.msra.mxu0 0.0
        %1007 = vmatprep.subr.mxu0 0.0
        %1008 = vmatpush1.msra.mxu0 0.0
        %1009 = vmatprep.subr.mxu0 0.0
        %1010 = vmatpush1.msra.mxu0 0.0
        %1011 = vmatprep.subr.mxu0 0.0
        %1012 = vmatpush1.msra.mxu0 0.0
        %1013 = vmatprep.subr.mxu0 0.0
        %1014 = vmatpush1.msra.mxu0 0.0
        %1015 = vmatprep.subr.mxu0 0.0
        %1016 = vmatpush1.msra.mxu0 0.0
        %1017 = vmatprep.mubr.f32.mxu0 0.0
        %1018 = vmatmul.mubr.f32.gmra.mrb[0].mxu0 %v914
        %v1019 = vpop.f32.mrb[0].mxu0
        %v1020 = vadd.f32 %v951, %v1019
        %v1021 = vpop.f32.mrb[0].mxu0
        %1022 = vmatprep.mubr.f32.mxu0 0.0
        %1023 = vmatmul.mubr.f32.gmra.mrb[0].mxu0 %v915
        %v1024 = vpop.f32.mrb[0].mxu0
        %v1025 = vadd.f32 %v951, %v1024
        %v1026 = vpop.f32.mrb[0].mxu0
        %1027 = vmatprep.mubr.f32.mxu0 0.0
        %1028 = vmatmul.mubr.f32.gmra.mrb[0].mxu0 %v916
        %v1029 = vpop.f32.mrb[0].mxu0
        %v1030 = vadd.f32 %v951, %v1029
        %v1031 = vpop.f32.mrb[0].mxu0
        %1032 = vmatprep.mubr.f32.mxu0 0.0
        %1033 = vmatmul.mubr.f32.gmra.mrb[0].mxu0 %v917
        %v1034 = vpop.f32.mrb[0].mxu0
        %v1035 = vadd.f32 %v951, %v1034
        %v1036 = vpop.f32.mrb[0].mxu0
        %1037 = vmatprep.mubr.f32.mxu0 0.0
        %1038 = vmatmul.mubr.f32.gmra.mrb[0].mxu0 %v918
        %v1039 = vpop.f32.mrb[0].mxu0
        %v1040 = vadd.f32 %v951, %v1039
        %v1041 = vpop.f32.mrb[0].mxu0
        %1042 = vmatprep.mubr.f32.mxu0 0.0
        %1043 = vmatmul.mubr.f32.gmra.mrb[0].mxu0 %v919
        %v1044 = vpop.f32.mrb[0].mxu0
        %v1045 = vadd.f32 %v951, %v1044
        %v1046 = vpop.f32.mrb[0].mxu0
        %1047 = vmatprep.mubr.f32.mxu0 0.0
        %1048 = vmatmul.mubr.f32.gmra.mrb[0].mxu0 %v920
        %v1049 = vpop.f32.mrb[0].mxu0
        %v1050 = vadd.f32 %v951, %v1049
        %v1051 = vpop.f32.mrb[0].mxu0
        %1052 = vmatprep.mubr.f32.mxu0 0.0
        %1053 = vmatmul.mubr.f32.gmra.mrb[0].mxu0 %v921
        %v1054 = vpop.f32.mrb[0].mxu0
        %v1055 = vadd.f32 %v951, %v1054
        %v1056 = vpop.f32.mrb[0].mxu0
        %1057 = vdwg.mxu0
        %1058 = vst [vmem:[%s264] sm:$0xff] %v1020
        %1059 = vst [vmem:[%s264 + $0x8] sm:$0xff] %v1025
        %1060 = vst [vmem:[%s264 + $0x10] sm:$0xff] %v1030
        %1061 = vst [vmem:[%s264 + $0x18] sm:$0xff] %v1035
        %1062 = vst [vmem:[%s264 + $0x20] sm:$0xff] %v1040
        %1063 = vst [vmem:[%s264 + $0x28] sm:$0xff] %v1045
        %1064 = vst [vmem:[%s264 + $0x30] sm:$0xff] %v1050
        %1065 = vst [vmem:[%s264 + $0x38] sm:$0xff] %v1055
        %s1066 = sand.u32 %s156, 1
        %s1067 = scalar_lea.sflag [#allocation3], %s1066
        %s1068 = sand.u32 %s156, 1
        %s1069 = smul.addr %s1068, 64
        %s1070 = scalar_lea.vmem [#allocation2], %s1069
        %s1071 = sand.u32 %s184, 1
        %s1072 = scalar_lea.sflag [#allocation5], %s1071
        %s1073 = sand.u32 %s184, 1
        %s1074 = smul.addr %s1073, 64
        %s1075 = scalar_lea.vmem [#allocation4], %s1074
        // Predicated region
        $region41: #{tpu_custom_call.1} parent=39 // pred_check
          %p1076 = pneg %p166
        $region42: #{tpu_custom_call.1} parent=39 // pred_check_branch
          %1078 = sbr.rel (%p1076) target = $region44
        $region43: #{tpu_custom_call.1} parent=39 // pred_region
          %s1079 = smul.u32 8, %s29
          %s1081 = ssub.s32 1024, 1024
          %1082 = vsyncadd %s1067, %s1081
          %s1083 = smul.addr %s28, 8
          %s1084 = sadd.s32 %s1079, %s1083
          %s1085 = smul.addr %s1084, 128
          %s1086 = scalar_lea.hbm %s5, %s1085
          %s1087 = sshll.u32 %s1070, 4
          %s1088 = int_to_ptr.vmem [resolvable:$true] %s1087
          %1093 = dma.vmem_to_hbm [thread:$0]  %s1088, 1024, %s1086, %s1067, 128, 128, 8
        $region44: #{tpu_custom_call.1} parent=39 // pred_fallthru
          _
        // Predicated region
        $region45: #{tpu_custom_call.1} parent=39 // pred_check
          %p1094 = pneg %p194
        $region46: #{tpu_custom_call.1} parent=39 // pred_check_branch
          %1096 = sbr.rel (%p1094) target = $region48
        $region47: #{tpu_custom_call.1} parent=39 // pred_region
          %s1097 = smul.u32 8, %s29
          %s1099 = ssub.s32 1024, 1024
          %1100 = vsyncadd %s1072, %s1099
          %s1101 = smul.addr %s28, 8
          %s1102 = sadd.s32 %s1097, %s1101
          %s1103 = smul.addr %s1102, 128
          %s1104 = scalar_lea.hbm %s6, %s1103
          %s1105 = sshll.u32 %s1075, 4
          %s1106 = int_to_ptr.vmem [resolvable:$true] %s1105
          %1111 = dma.vmem_to_hbm [thread:$0]  %s1106, 1024, %s1104, %s1072, 128, 128, 8
        $region48: #{tpu_custom_call.1} parent=39 // pred_fallthru
          _
      $region40: #{tpu_custom_call.1} parent=5 // pred_fallthru
        _
      %p1112 = scmp.le.s32.totalorder 2, %s19
      // Predicated region
      $region49: #{tpu_custom_call.1} parent=5 // pred_check
        %p1113 = pneg %p1112
      $region50: #{tpu_custom_call.1} parent=5 // pred_check_branch
        %1115 = sbr.rel (%p1113) target = $region52
      $region51: #{tpu_custom_call.1} parent=5 // pred_region
        %s1116 = ssub.s32 %s19, 2
        // Predicated region
        $region53: #{tpu_custom_call.1} parent=51 // pred_check
          %p1117 = pneg %p172
        $region54: #{tpu_custom_call.1} parent=51 // pred_check_branch
          %1119 = sbr.rel (%p1117) target = $region56
        $region55: #{tpu_custom_call.1} parent=51 // pred_region
          %s1120 = sand.u32 %s157, 1
          %s1121 = scalar_lea.sflag [#allocation3], %s1120
          %s1122 = sand.u32 %s157, 1
          %s1123 = smul.addr %s1122, 64
          %s1124 = scalar_lea.vmem [#allocation2], %s1123
          %1125 = dma.done %s1121, 1024
        $region56: #{tpu_custom_call.1} parent=51 // pred_fallthru
          _
        // Predicated region
        $region57: #{tpu_custom_call.1} parent=51 // pred_check
          %p1126 = pneg %p200
        $region58: #{tpu_custom_call.1} parent=51 // pred_check_branch
          %1128 = sbr.rel (%p1126) target = $region60
        $region59: #{tpu_custom_call.1} parent=51 // pred_region
          %s1129 = sand.u32 %s185, 1
          %s1130 = scalar_lea.sflag [#allocation5], %s1129
          %s1131 = sand.u32 %s185, 1
          %s1132 = smul.addr %s1131, 64
          %s1133 = scalar_lea.vmem [#allocation4], %s1132
          %1134 = dma.done %s1130, 1024
        $region60: #{tpu_custom_call.1} parent=51 // pred_fallthru
          _
      $region52: #{tpu_custom_call.1} parent=5 // pred_fallthru
        _
    $region6: #{tpu_custom_call.1} parent=1 // loop_footer
      %s23 = sadd.s32 1, %s19
    $region7: #{tpu_custom_call.1} parent=1 // loop_footer_branch
      %18 = sbr.rel target = $region3
    $region8: #{tpu_custom_call.1} parent=1 // loop_exit
      _
    %1135 = vsyncpa [#allocation3], 1
    %s1136 = scalar_lea.sflag [#allocation3], 1
    %1137 = vsyncpa %s1136, 1
    %1138 = vsyncpa [#allocation5], 1
    %s1139 = scalar_lea.sflag [#allocation5], 1
    %1140 = vsyncpa %s1139, 1

</llo_original>
